<compile_context>
chip_gen: v7x
topology: tpu7x:2x2x1
jax: 0.10.0
libtpu: 0.0.40
codegen_flags: <defaults>
</compile_context>

<pallas_src>
import functools

import jax
import jax.numpy as jnp
from jax.experimental import pallas as pl
from jax.experimental.pallas import tpu as pltpu


def _choose_hw_tile(channels, hw, itemsize, max_tile_bytes=2 * 1024 * 1024):
    """Largest multiple-of-128 divisor of `hw` within a per-tile byte budget."""
    if hw % 128 != 0:
        # Cannot tile lane-densely without masking; use the full spatial extent.
        return hw
    budget_lanes = max(128, (max_tile_bytes // (channels * itemsize)) // 128 * 128)
    t = min(hw, budget_lanes)
    while t > 128 and hw % t != 0:
        t -= 128
    return t


def se_gate_kernel(x_ref, w1_ref, b1_ref, w2_ref, b2_ref, s_ref, acc_ref, *, inv_hw):
    """Squeeze (streamed spatial mean, f32 accum) + excitation MLP -> (1, C, 1) gates."""
    hw = pl.program_id(1)

    @pl.when(hw == 0)
    def _():
        acc_ref[...] = jnp.zeros_like(acc_ref)

    # Partial spatial sum for this tile; x is not kept live past this line
    # (avoids holding a big tile in vregs across the MLP).
    acc_ref[...] += jnp.sum(x_ref[...].astype(jnp.float32), axis=-1)       # (1, C)

    @pl.when(hw == pl.num_programs(1) - 1)
    def _():
        pooled = acc_ref[...] * inv_hw                                     # (1, C)
        h = jnp.dot(pooled, w1_ref[...],
                    preferred_element_type=jnp.float32) + b1_ref[...]      # (1, Cr)
        h = jnp.maximum(h, 0.0)
        z = jnp.dot(h, w2_ref[...],
                    preferred_element_type=jnp.float32) + b2_ref[...]      # (1, C)
        s = jax.nn.sigmoid(z)
        # Single per-sample relayout: C moves to sublanes so the streaming
        # scale kernel broadcasts over lanes with no per-tile transpose.
        s_ref[...] = s[:, :, None]                                         # (1, C, 1)


def se_scale_kernel(x_ref, s_ref, o_ref):
    """out = x * s, with s broadcast over the spatial (lane) axis."""
    o_ref[...] = (x_ref[...] * s_ref[...]).astype(o_ref.dtype)


def se_block(x_nchw, w1, b1, w2, b2):
    """x_nchw: (N, C, H, W). Returns (N, C, H, W) = SEBlock(x)."""
    N, C, H, W = x_nchw.shape
    HW = H * W
    Cr = w1.shape[1]
    itemsize = jnp.dtype(x_nchw.dtype).itemsize

    x_flat = x_nchw.reshape(N, C, HW)

    hw_tile = _choose_hw_tile(C, HW, itemsize)
    n_hw = HW // hw_tile

    # Safe on v5e (default scoped 16 MiB), v6e and v7x (64 MiB physical);
    # tiles are <= ~2 MiB so double-buffered in/out fits comfortably.
    vmem_limit = 32 * 1024 * 1024

    # ---- pass 1: squeeze + excitation -> per-sample gates s: (N, C, 1) f32 ----
    gate_cost = pl.CostEstimate(
        flops=int(N * C * HW + 4 * N * C * Cr),
        transcendentals=int(N * C),
        bytes_accessed=int(N * C * HW * itemsize + N * C * 4
                           + (C * Cr + Cr + Cr * C + C) * 4),
    )
    s = pl.pallas_call(
        functools.partial(se_gate_kernel, inv_hw=1.0 / HW),
        out_shape=jax.ShapeDtypeStruct((N, C, 1), jnp.float32),
        grid=(N, n_hw),
        in_specs=[
            pl.BlockSpec((1, C, hw_tile), lambda n, hw: (n, 0, hw)),  # x tile
            pl.BlockSpec((C, Cr), lambda n, hw: (0, 0)),              # w1 (grid-invariant)
            pl.BlockSpec((1, Cr), lambda n, hw: (0, 0)),              # b1
            pl.BlockSpec((Cr, C), lambda n, hw: (0, 0)),              # w2
            pl.BlockSpec((1, C), lambda n, hw: (0, 0)),               # b2
        ],
        out_specs=pl.BlockSpec((1, C, 1), lambda n, hw: (n, 0, 0)),
        scratch_shapes=[pltpu.VMEM((1, C), jnp.float32)],
        compiler_params=pltpu.CompilerParams(
            dimension_semantics=("parallel", "arbitrary"),
            vmem_limit_bytes=vmem_limit),
        cost_estimate=gate_cost,
    )(x_flat, w1, b1, w2, b2)

    # ---- pass 2: scale -> out = x * s, fully parallel, lane-dense tiles ----
    scale_cost = pl.CostEstimate(
        flops=int(N * C * HW),
        transcendentals=0,
        bytes_accessed=int(2 * N * C * HW * itemsize + N * C * 4),
    )
    out_flat = pl.pallas_call(
        se_scale_kernel,
        out_shape=jax.ShapeDtypeStruct((N, C, HW), x_nchw.dtype),
        grid=(N, n_hw),
        in_specs=[
            pl.BlockSpec((1, C, hw_tile), lambda n, hw: (n, 0, hw)),  # x tile
            pl.BlockSpec((1, C, 1), lambda n, hw: (n, 0, 0)),         # gates
        ],
        out_specs=pl.BlockSpec((1, C, hw_tile), lambda n, hw: (n, 0, hw)),
        compiler_params=pltpu.CompilerParams(
            dimension_semantics=("parallel", "parallel"),
            vmem_limit_bytes=vmem_limit),
        cost_estimate=scale_cost,
    )(x_flat, s)

    return out_flat.reshape(N, C, H, W)


if __name__ == "__main__":
    # Shapes consistent with SEBlock(in_channels=32, reduction=16)
    N, C, H, W = 2, 32, 16, 16
    reduction = 16
    Cr = C // reduction  # 2

    key = jax.random.PRNGKey(0)
    kx, kw1, kb1, kw2, kb2 = jax.random.split(key, 5)

    x = jax.random.normal(kx, (N, C, H, W), dtype=jnp.float32)
    # fc weights stored as (in, out); biases kept 2D (1, out) for TPU friendliness.
    w1 = jax.random.normal(kw1, (C, Cr), dtype=jnp.float32) * 0.1
    b1 = jax.random.normal(kb1, (1, Cr), dtype=jnp.float32) * 0.1
    w2 = jax.random.normal(kw2, (Cr, C), dtype=jnp.float32) * 0.1
    b2 = jax.random.normal(kb2, (1, C), dtype=jnp.float32) * 0.1

    out = se_block(x, w1, b1, w2, b2)
    jax.block_until_ready(out)

    # Pure-JAX reference check (same math as the PyTorch forward).
    pooled = jnp.mean(x, axis=(2, 3))                    # (N, C)
    h = jnp.maximum(pooled @ w1 + b1, 0.0)
    gate = jax.nn.sigmoid(h @ w2 + b2)
    ref = x * gate[:, :, None, None]
    assert jnp.allclose(out, ref, atol=1e-5, rtol=1e-5)

    print("KERNEL_OK")
</pallas_src>

<mosaic_0001>
module attributes {stable_mosaic.version = 11 : i64} {
  func.func @se_gate_kernel(%arg0: i32, %arg1: i32, %arg2: memref<1x32x256xf32, #tpu.memory_space<vmem>>, %arg3: memref<32x2xf32, #tpu.memory_space<vmem>>, %arg4: memref<1x2xf32, #tpu.memory_space<vmem>>, %arg5: memref<2x32xf32, #tpu.memory_space<vmem>>, %arg6: memref<1x32xf32, #tpu.memory_space<vmem>>, %arg7: memref<1x32x1xf32, #tpu.memory_space<vmem>>, %arg8: memref<1x32xf32, #tpu.memory_space<vmem>>) attributes {dimension_semantics = [#tpu.dimension_semantics<parallel>, #tpu.dimension_semantics<arbitrary>], iteration_bounds = array<i64: 2, 1>, scalar_prefetch = 0 : i64, scratch_operands = 1 : i64, tpu.core_type = #tpu.core_type<tc>, window_params = [{transform_indices = @transform_0, window_bounds = array<i64: 1, 32, 256>}, {pipeline_mode = #tpu.pipeline_mode<synchronous>, transform_indices = @transform_1, window_bounds = array<i64: 32, 2>}, {pipeline_mode = #tpu.pipeline_mode<synchronous>, transform_indices = @transform_2, window_bounds = array<i64: 1, 2>}, {pipeline_mode = #tpu.pipeline_mode<synchronous>, transform_indices = @transform_3, window_bounds = array<i64: 2, 32>}, {pipeline_mode = #tpu.pipeline_mode<synchronous>, transform_indices = @transform_4, window_bounds = array<i64: 1, 32>}, {transform_indices = @transform_5, window_bounds = array<i64: 1, 32, 1>}]} {
    %c0_i32 = arith.constant 0 : i32
    %0 = arith.cmpi eq, %arg1, %c0_i32 : i32
    %1 = arith.extui %0 : i1 to i32
    %c0_i32_0 = arith.constant 0 : i32
    %2 = arith.cmpi ne, %1, %c0_i32_0 : i32
    scf.if %2 {
      %cst_9 = arith.constant 0.000000e+00 : f32
      %11 = vector.broadcast %cst_9 : f32 to vector<1x32xf32>
      %c0_10 = arith.constant 0 : index
      %c0_11 = arith.constant 0 : index
      %12 = vector.load %arg8[%c0_10, %c0_11] : memref<1x32xf32, #tpu.memory_space<vmem>>, vector<1x32xf32>
      tpu.vector_store %arg8[%c0_10, %c0_11], %11 {strides = array<i32>} : memref<1x32xf32, #tpu.memory_space<vmem>>, vector<1x32xf32>,
    } else {
    }
    %c0 = arith.constant 0 : index
    %c0_1 = arith.constant 0 : index
    %3 = vector.load %arg8[%c0, %c0_1] : memref<1x32xf32, #tpu.memory_space<vmem>>, vector<1x32xf32>
    %c0_2 = arith.constant 0 : index
    %c0_3 = arith.constant 0 : index
    %c0_4 = arith.constant 0 : index
    %4 = vector.load %arg2[%c0_2, %c0_3, %c0_4] : memref<1x32x256xf32, #tpu.memory_space<vmem>>, vector<1x32x256xf32>
    %cst = arith.constant dense<0.000000e+00> : vector<1x32xf32>
    %5 = vector.multi_reduction <add>, %4, %cst [2] : vector<1x32x256xf32> to vector<1x32xf32>
    %6 = arith.addf %3, %5 : vector<1x32xf32>
    %c0_5 = arith.constant 0 : index
    %c0_6 = arith.constant 0 : index
    %7 = vector.load %arg8[%c0_5, %c0_6] : memref<1x32xf32, #tpu.memory_space<vmem>>, vector<1x32xf32>
    tpu.vector_store %arg8[%c0_5, %c0_6], %6 {strides = array<i32>} : memref<1x32xf32, #tpu.memory_space<vmem>>, vector<1x32xf32>,
    %c0_i32_7 = arith.constant 0 : i32
    %8 = arith.cmpi eq, %arg1, %c0_i32_7 : i32
    %9 = arith.extui %8 : i1 to i32
    %c0_i32_8 = arith.constant 0 : i32
    %10 = arith.cmpi ne, %9, %c0_i32_8 : i32
    scf.if %10 {
      %c0_9 = arith.constant 0 : index
      %c0_10 = arith.constant 0 : index
      %11 = vector.load %arg8[%c0_9, %c0_10] : memref<1x32xf32, #tpu.memory_space<vmem>>, vector<1x32xf32>
      %cst_11 = arith.constant 3.906250e-03 : f32
      %12 = vector.broadcast %cst_11 : f32 to vector<1x32xf32>
      %13 = arith.mulf %11, %12 : vector<1x32xf32>
      %c0_12 = arith.constant 0 : index
      %c0_13 = arith.constant 0 : index
      %14 = vector.load %arg3[%c0_12, %c0_13] : memref<32x2xf32, #tpu.memory_space<vmem>>, vector<32x2xf32>
      %cst_14 = arith.constant dense<0.000000e+00> : vector<1x2xf32>
      %15 = tpu.matmul %13, %14, %cst_14 {dimension_numbers = #tpu.dot_dimension_numbers<[1], [0], [0], [1], [0, 0, 1, 1], [], []>} : vector<1x32xf32>, vector<32x2xf32>, vector<1x2xf32> -> vector<1x2xf32>
      %c0_15 = arith.constant 0 : index
      %c0_16 = arith.constant 0 : index
      %16 = vector.load %arg4[%c0_15, %c0_16] : memref<1x2xf32, #tpu.memory_space<vmem>>, vector<1x2xf32>
      %17 = arith.addf %15, %16 : vector<1x2xf32>
      %cst_17 = arith.constant 0.000000e+00 : f32
      %18 = vector.broadcast %cst_17 : f32 to vector<1x2xf32>
      %19 = arith.maximumf %17, %18 : vector<1x2xf32>
      %c0_18 = arith.constant 0 : index
      %c0_19 = arith.constant 0 : index
      %20 = vector.load %arg5[%c0_18, %c0_19] : memref<2x32xf32, #tpu.memory_space<vmem>>, vector<2x32xf32>
      %cst_20 = arith.constant dense<0.000000e+00> : vector<1x32xf32>
      %21 = tpu.matmul %19, %20, %cst_20 {dimension_numbers = #tpu.dot_dimension_numbers<[1], [0], [0], [1], [0, 0, 1, 1], [], []>} : vector<1x2xf32>, vector<2x32xf32>, vector<1x32xf32> -> vector<1x32xf32>
      %c0_21 = arith.constant 0 : index
      %c0_22 = arith.constant 0 : index
      %22 = vector.load %arg6[%c0_21, %c0_22] : memref<1x32xf32, #tpu.memory_space<vmem>>, vector<1x32xf32>
      %23 = arith.addf %21, %22 : vector<1x32xf32>
      %24 = arith.negf %23 : vector<1x32xf32>
      %25 = math.exp %24 : vector<1x32xf32>
      %cst_23 = arith.constant 1.000000e+00 : f32
      %26 = vector.broadcast %cst_23 : f32 to vector<1x32xf32>
      %27 = arith.addf %26, %25 : vector<1x32xf32>
      %28 = arith.divf %26, %27 : vector<1x32xf32>
      %29 = vector.shape_cast %28 : vector<1x32xf32> to vector<1x32x1xf32>
      %c0_24 = arith.constant 0 : index
      %c0_25 = arith.constant 0 : index
      %c0_26 = arith.constant 0 : index
      %30 = vector.load %arg7[%c0_24, %c0_25, %c0_26] : memref<1x32x1xf32, #tpu.memory_space<vmem>>, vector<1x32x1xf32>
      tpu.vector_store %arg7[%c0_24, %c0_25, %c0_26], %29 {strides = array<i32>} : memref<1x32x1xf32, #tpu.memory_space<vmem>>, vector<1x32x1xf32>,
    } else {
    }
    return
  }
  func.func @transform_0(%arg0: i32, %arg1: i32) -> (i32, i32, i32) {
    %c0_i32 = arith.constant 0 : i32
    %c0_i32_0 = arith.constant 0 : i32
    return %arg0, %c0_i32, %arg1 : i32, i32, i32
  }
  func.func @transform_1(%arg0: i32, %arg1: i32) -> (i32, i32) {
    %c0_i32 = arith.constant 0 : i32
    %c0_i32_0 = arith.constant 0 : i32
    %c0_i32_1 = arith.constant 0 : i32
    return %c0_i32, %c0_i32_0 : i32, i32
  }
  func.func @transform_2(%arg0: i32, %arg1: i32) -> (i32, i32) {
    %c0_i32 = arith.constant 0 : i32
    %c0_i32_0 = arith.constant 0 : i32
    %c0_i32_1 = arith.constant 0 : i32
    return %c0_i32, %c0_i32_0 : i32, i32
  }
  func.func @transform_3(%arg0: i32, %arg1: i32) -> (i32, i32) {
    %c0_i32 = arith.constant 0 : i32
    %c0_i32_0 = arith.constant 0 : i32
    %c0_i32_1 = arith.constant 0 : i32
    return %c0_i32, %c0_i32_0 : i32, i32
  }
  func.func @transform_4(%arg0: i32, %arg1: i32) -> (i32, i32) {
    %c0_i32 = arith.constant 0 : i32
    %c0_i32_0 = arith.constant 0 : i32
    %c0_i32_1 = arith.constant 0 : i32
    return %c0_i32, %c0_i32_0 : i32, i32
  }
  func.func @transform_5(%arg0: i32, %arg1: i32) -> (i32, i32, i32) {
    %c0_i32 = arith.constant 0 : i32
    %c0_i32_0 = arith.constant 0 : i32
    %c0_i32_1 = arith.constant 0 : i32
    return %arg0, %c0_i32, %c0_i32_0 : i32, i32, i32
  }
}

</mosaic_0001>

<llo_original>
// kernel: tpu_custom_call.1
$region0: #{tpu_custom_call.1}
  #allocation0 [shape = 'u32[]', space=smem, size = 0x4, offset = 0x4, fixed_abs, tag = 'smem constant byte address 0x4 - core index']
  #allocation1 [shape = 'u32[144,128]{1,0:T(1,128)}', space=vmem, size = 0x12000, scoped, tag = 'internal scratch']
  #allocation2 [shape = 'f32[1,32]{1,0:T(1,128)}', space=vmem, size = 0x200, scoped, tag = 'scratch operand']
  %s0 = inlined_call_operand.hbm [shape: f32[2,32,256], index: 0, kind: input, shape index: {}]
  %s1 = inlined_call_operand.vmem [shape: f32[32,2], index: 1, kind: input, shape index: {}]
  %s2 = inlined_call_operand.vmem [shape: f32[1,2], index: 2, kind: input, shape index: {}]
  %s3 = inlined_call_operand.vmem [shape: f32[2,32], index: 3, kind: input, shape index: {}]
  %s4 = inlined_call_operand.vmem [shape: f32[1,32], index: 4, kind: input, shape index: {}]
  %s5 = inlined_call_operand.vmem [shape: f32[2,32,1], index: 5, kind: output, shape index: {}]
  %s6 = sld [smem:[#allocation0]]
  $region65: #{tpu_custom_call.1} parent=0
    _
  %s8 = ssub.s32 1, %s6
  %s9 = scalar_select 0, %s8, %s6
  $region1: #{tpu_custom_call.1} parent=0
    #allocation3 [shape = 'u8[65536]{0}', space=vmem, size = 0x10000, scoped, tag = 'input window, operand 0']
    #allocation4 [shape = 's32[2]{0}', space=sflag, size = 0x8, scoped, tag = 'scoped memory for tpu_custom_call.1']
    %10 = vsyncpa [#allocation4], 0
    %s11 = scalar_lea.sflag [#allocation4], 1
    %12 = vsyncpa %s11, 0
    loop: start=0, step=1, limit=4
    $region2: #{tpu_custom_call.1} parent=1 // loop_pre_header
      _
    $region3: #{tpu_custom_call.1} parent=1 // loop_header
      %s14 = sphi 0, %s18
      %p15 = scmp.ge.s32.totalorder %s14, 4
      %s21 = sphi 0, %s33
      %s22 = sphi 0, %s29
      %s23 = sphi 0, %s21
      %s24 = sphi 0, %s22
      %s25 = sphi 0, %s23
      %s26 = sphi 0, %s24
      %s38 = sphi 0, %s40
      %s41 = sphi 0, %s38
      %s42 = sphi 0, %s41
      %s58 = sphi 0, %s42
      %s62 = sphi 0, %s62
      %s64 = sphi 0, %s62
      %s65 = sphi 0, %s64
      %s79 = sphi 0, %s65
      %s83 = sphi 0, %s83
      %s85 = sphi 0, %s83
      %s86 = sphi 0, %s85
      %s100 = sphi 0, %s86
      %s104 = sphi 0, %s104
      %s106 = sphi 0, %s104
      %s107 = sphi 0, %s106
      %s121 = sphi 0, %s107
      %s125 = sphi 0, %s125
      %s127 = sphi 0, %s125
      %s128 = sphi 0, %s127
      %s142 = sphi 0, %s128
      %s148 = sphi 0, %s150
      %s151 = sphi 0, %s148
      %s152 = sphi 0, %s151
      %s168 = sphi 0, %s152
    $region4: #{tpu_custom_call.1} parent=1 // loop_header_branch
      %17 = sbr.rel (%p15) target = $region8
    $region5: #{tpu_custom_call.1} parent=1 // loop_body
      %s19 = ssub.s32 %s14, 1
      %s20 = ssub.s32 %s14, 2
      %s27 = sadd.s32 1, %s22
      %p28 = scmp.ge.s32.totalorder %s27, 1
      %s29 = scalar_select %p28, 0, %s27
      %s30 = sadd.s32 1, %s21
      %s31 = scalar_select %p28, %s30, %s21
      %p32 = scmp.ge.s32.totalorder %s31, 2
      %s33 = scalar_select %p32, 0, %s31
      %s34 = ssub.s32 %s21, %s33
      %s35 = ssub.s32 %s22, %s29
      %s36 = sor.u32 %s34, %s35
      %p37 = scmp.eq.s32.totalorder %s36, 0
      %s39 = sadd.s32 %s38, 1
      %s40 = scalar_select %p37, %s38, %s39
      %p43 = pneg %p37
      %p44 = scmp.eq.s32.totalorder %s14, 1
      %p45 = por %p43, %p44
      %p46 = scmp.ne.s32.totalorder %s38, %s41
      %p47 = scmp.eq.s32.totalorder %s14, 0
      %p48 = por %p46, %p47
      %p49 = scmp.ne.s32.totalorder %s38, %s41
      %p50 = scmp.eq.s32.totalorder %s19, 1
      %p51 = por %p49, %p50
      %p52 = scmp.ne.s32.totalorder %s41, %s42
      %p53 = scmp.eq.s32.totalorder %s19, 0
      %p54 = por %p52, %p53
      %p55 = scmp.ne.s32.totalorder %s41, %s42
      %p56 = scmp.eq.s32.totalorder %s20, 1
      %p57 = por %p55, %p56
      %p59 = scmp.ne.s32.totalorder %s42, %s58
      %p60 = scmp.eq.s32.totalorder %s20, 0
      %p61 = por %p59, %p60
      %s63 = sadd.s32 %s62, 1
      %p66 = scmp.eq.s32.totalorder %s14, 1
      %p67 = scmp.ne.s32.totalorder %s62, %s64
      %p68 = scmp.eq.s32.totalorder %s14, 0
      %p69 = por %p67, %p68
      %p70 = scmp.ne.s32.totalorder %s62, %s64
      %p71 = scmp.eq.s32.totalorder %s19, 1
      %p72 = por %p70, %p71
      %p73 = scmp.ne.s32.totalorder %s64, %s65
      %p74 = scmp.eq.s32.totalorder %s19, 0
      %p75 = por %p73, %p74
      %p76 = scmp.ne.s32.totalorder %s64, %s65
      %p77 = scmp.eq.s32.totalorder %s20, 1
      %p78 = por %p76, %p77
      %p80 = scmp.ne.s32.totalorder %s65, %s79
      %p81 = scmp.eq.s32.totalorder %s20, 0
      %p82 = por %p80, %p81
      %s84 = sadd.s32 %s83, 1
      %p87 = scmp.eq.s32.totalorder %s14, 1
      %p88 = scmp.ne.s32.totalorder %s83, %s85
      %p89 = scmp.eq.s32.totalorder %s14, 0
      %p90 = por %p88, %p89
      %p91 = scmp.ne.s32.totalorder %s83, %s85
      %p92 = scmp.eq.s32.totalorder %s19, 1
      %p93 = por %p91, %p92
      %p94 = scmp.ne.s32.totalorder %s85, %s86
      %p95 = scmp.eq.s32.totalorder %s19, 0
      %p96 = por %p94, %p95
      %p97 = scmp.ne.s32.totalorder %s85, %s86
      %p98 = scmp.eq.s32.totalorder %s20, 1
      %p99 = por %p97, %p98
      %p101 = scmp.ne.s32.totalorder %s86, %s100
      %p102 = scmp.eq.s32.totalorder %s20, 0
      %p103 = por %p101, %p102
      %s105 = sadd.s32 %s104, 1
      %p108 = scmp.eq.s32.totalorder %s14, 1
      %p109 = scmp.ne.s32.totalorder %s104, %s106
      %p110 = scmp.eq.s32.totalorder %s14, 0
      %p111 = por %p109, %p110
      %p112 = scmp.ne.s32.totalorder %s104, %s106
      %p113 = scmp.eq.s32.totalorder %s19, 1
      %p114 = por %p112, %p113
      %p115 = scmp.ne.s32.totalorder %s106, %s107
      %p116 = scmp.eq.s32.totalorder %s19, 0
      %p117 = por %p115, %p116
      %p118 = scmp.ne.s32.totalorder %s106, %s107
      %p119 = scmp.eq.s32.totalorder %s20, 1
      %p120 = por %p118, %p119
      %p122 = scmp.ne.s32.totalorder %s107, %s121
      %p123 = scmp.eq.s32.totalorder %s20, 0
      %p124 = por %p122, %p123
      %s126 = sadd.s32 %s125, 1
      %p129 = scmp.eq.s32.totalorder %s14, 1
      %p130 = scmp.ne.s32.totalorder %s125, %s127
      %p131 = scmp.eq.s32.totalorder %s14, 0
      %p132 = por %p130, %p131
      %p133 = scmp.ne.s32.totalorder %s125, %s127
      %p134 = scmp.eq.s32.totalorder %s19, 1
      %p135 = por %p133, %p134
      %p136 = scmp.ne.s32.totalorder %s127, %s128
      %p137 = scmp.eq.s32.totalorder %s19, 0
      %p138 = por %p136, %p137
      %p139 = scmp.ne.s32.totalorder %s127, %s128
      %p140 = scmp.eq.s32.totalorder %s20, 1
      %p141 = por %p139, %p140
      %p143 = scmp.ne.s32.totalorder %s128, %s142
      %p144 = scmp.eq.s32.totalorder %s20, 0
      %p145 = por %p143, %p144
      %s146 = ssub.s32 %s21, %s33
      %p147 = scmp.eq.s32.totalorder %s146, 0
      %s149 = sadd.s32 %s148, 1
      %s150 = scalar_select %p147, %s148, %s149
      %p153 = pneg %p147
      %p154 = scmp.eq.s32.totalorder %s14, 1
      %p155 = por %p153, %p154
      %p156 = scmp.ne.s32.totalorder %s148, %s151
      %p157 = scmp.eq.s32.totalorder %s14, 0
      %p158 = por %p156, %p157
      %p159 = scmp.ne.s32.totalorder %s148, %s151
      %p160 = scmp.eq.s32.totalorder %s19, 1
      %p161 = por %p159, %p160
      %p162 = scmp.ne.s32.totalorder %s151, %s152
      %p163 = scmp.eq.s32.totalorder %s19, 0
      %p164 = por %p162, %p163
      %p165 = scmp.ne.s32.totalorder %s151, %s152
      %p166 = scmp.eq.s32.totalorder %s20, 1
      %p167 = por %p165, %p166
      %p169 = scmp.ne.s32.totalorder %s152, %s168
      %p170 = scmp.eq.s32.totalorder %s20, 0
      %p171 = por %p169, %p170
      %p172 = scmp.le.s32.totalorder 1, %s14
      %p173 = scmp.lt.s32.totalorder %s14, 3
      %p174 = pnand %p172, %p173
      %p175 = pneg %p174
      // Predicated region
      $region9: #{tpu_custom_call.1} parent=5 // pred_check
        _
      $region10: #{tpu_custom_call.1} parent=5 // pred_check_branch
        %177 = sbr.rel (%p174) target = $region12
      $region11: #{tpu_custom_call.1} parent=5 // pred_region
        %s178 = ssub.s32 %s14, 1
        // Predicated region
        $region13: #{tpu_custom_call.1} parent=11 // pred_check
          %p179 = pneg %p75
        $region14: #{tpu_custom_call.1} parent=11 // pred_check_branch
          %181 = sbr.rel (%p179) target = $region16
        $region15: #{tpu_custom_call.1} parent=11 // pred_region
          _
        $region16: #{tpu_custom_call.1} parent=11 // pred_fallthru
          _
        // Predicated region
        $region17: #{tpu_custom_call.1} parent=11 // pred_check
          %p182 = pneg %p96
        $region18: #{tpu_custom_call.1} parent=11 // pred_check_branch
          %184 = sbr.rel (%p182) target = $region20
        $region19: #{tpu_custom_call.1} parent=11 // pred_region
          _
        $region20: #{tpu_custom_call.1} parent=11 // pred_fallthru
          _
        // Predicated region
        $region21: #{tpu_custom_call.1} parent=11 // pred_check
          %p185 = pneg %p117
        $region22: #{tpu_custom_call.1} parent=11 // pred_check_branch
          %187 = sbr.rel (%p185) target = $region24
        $region23: #{tpu_custom_call.1} parent=11 // pred_region
          _
        $region24: #{tpu_custom_call.1} parent=11 // pred_fallthru
          _
        // Predicated region
        $region25: #{tpu_custom_call.1} parent=11 // pred_check
          %p188 = pneg %p138
        $region26: #{tpu_custom_call.1} parent=11 // pred_check_branch
          %190 = sbr.rel (%p188) target = $region28
        $region27: #{tpu_custom_call.1} parent=11 // pred_region
          _
        $region28: #{tpu_custom_call.1} parent=11 // pred_fallthru
          _
      $region12: #{tpu_custom_call.1} parent=5 // pred_fallthru
        _
      %p191 = scmp.lt.s32.totalorder %s14, 2
      // Predicated region
      $region29: #{tpu_custom_call.1} parent=5 // pred_check
        %p192 = pneg %p191
      $region30: #{tpu_custom_call.1} parent=5 // pred_check_branch
        %194 = sbr.rel (%p192) target = $region32
      $region31: #{tpu_custom_call.1} parent=5 // pred_region
        // Predicated region
        $region33: #{tpu_custom_call.1} parent=31 // pred_check
          %p195 = pneg %p48
        $region34: #{tpu_custom_call.1} parent=31 // pred_check_branch
          %197 = sbr.rel (%p195) target = $region36
        $region35: #{tpu_custom_call.1} parent=31 // pred_region
          %s198 = sand.u32 %s38, 1
          %s199 = scalar_lea.sflag [#allocation4], %s198
          %s200 = sand.u32 %s38, 1
          %s201 = smul.addr %s200, 64
          %s202 = scalar_lea.vmem [#allocation3], %s201
          %s203 = smul.u32 2, %s22
          %s205 = ssub.s32 1024, 1024
          %206 = vsyncadd %s199, %s205
          %s207 = smul.addr %s21, 8
          %s208 = sadd.s32 %s203, %s207
          %s209 = smul.addr %s208, 128
          %s210 = scalar_lea.hbm %s0, %s209
          %s211 = sshll.u32 %s202, 4
          %s212 = int_to_ptr.vmem [resolvable:$true] %s211
          %217 = dma.hbm_to_vmem [thread:$0]  %s210, 1024, %s212, %s199, 256, 256, 16
        $region36: #{tpu_custom_call.1} parent=31 // pred_fallthru
          _
      $region32: #{tpu_custom_call.1} parent=5 // pred_fallthru
        _
      %p218 = scmp.le.s32.totalorder 1, %s14
      %p219 = scmp.lt.s32.totalorder %s14, 3
      %p220 = pnand %p218, %p219
      %p221 = pneg %p220
      // Predicated region
      $region37: #{tpu_custom_call.1} parent=5 // pred_check
        _
      $region38: #{tpu_custom_call.1} parent=5 // pred_check_branch
        %223 = sbr.rel (%p220) target = $region40
      $region39: #{tpu_custom_call.1} parent=5 // pred_region
        %s224 = ssub.s32 %s14, 1
        %s225 = sand.u32 %s41, 1
        %s226 = scalar_lea.sflag [#allocation4], %s225
        %s227 = sand.u32 %s41, 1
        %s228 = smul.addr %s227, 64
        %s229 = scalar_lea.vmem [#allocation3], %s228
        // Predicated region
        $region41: #{tpu_custom_call.1} parent=39 // pred_check
          %p230 = pneg %p54
        $region42: #{tpu_custom_call.1} parent=39 // pred_check_branch
          %232 = sbr.rel (%p230) target = $region44
        $region43: #{tpu_custom_call.1} parent=39 // pred_region
          %233 = dma.done %s226, 1024
        $region44: #{tpu_custom_call.1} parent=39 // pred_fallthru
          _
        %s234 = sand.u32 %s41, 1
        %s235 = scalar_lea.sflag [#allocation4], %s234
        %s236 = sand.u32 %s41, 1
        %s237 = smul.addr %s236, 64
        %s238 = scalar_lea.vmem [#allocation3], %s237
        %p239 = pneg %p54
        %p240 = pneg %p51
        %p241 = pneg %p75
        %p242 = pneg %p72
        %p243 = pneg %p96
        %p244 = pneg %p93
        %p245 = pneg %p117
        %p246 = pneg %p114
        %p247 = pneg %p138
        %p248 = pneg %p135
        %p249 = pneg %p164
        %p250 = pneg %p161
        %p251 = scmp.lt.s32.totalorder %s23, 1
        %s252 = scalar_select %p251, %s23, 1
        %s253 = smul.addr %s252, 4
        %s254 = smul.addr %s253, 8
        %s255 = scalar_lea.vmem %s5, %s254
        %s256 = smul.u32 2, %s24
        %p257 = scmp.lt.s32.totalorder %s23, 1
        %s258 = scalar_select %p257, %s23, 1
        %s259 = smul.addr %s258, 4
        %s260 = smul.addr %s259, 8
        %s261 = scalar_lea.vmem %s5, %s260
        %p262 = scmp.eq.s32.totalorder %s24, 0
        // Predicated region
        $region45: #{tpu_custom_call.1} parent=39 // pred_check
          %p263 = pneg %p262
        $region46: #{tpu_custom_call.1} parent=39 // pred_check_branch
          %265 = sbr.rel (%p263) target = $region48
        $region47: #{tpu_custom_call.1} parent=39 // pred_region
          %vm266 = vcmask 253952
          %267 = vst.msk [vmem:[#allocation2] sm:$0x1] %vm266, 0.0
        $region48: #{tpu_custom_call.1} parent=39 // pred_fallthru
          _
        %v268 = vld [vmem:[#allocation2] sm:$0x1]
        %v269 = vld [vmem:[%s229] sm:$0xff]
        %v270 = vld [vmem:[%s229 + $0x8] sm:$0xff]
        %v271 = vld [vmem:[%s229 + $0x10] sm:$0xff]
        %v272 = vld [vmem:[%s229 + $0x18] sm:$0xff]
        %v273 = vld [vmem:[%s229 + $0x20] sm:$0xff]
        %v274 = vld [vmem:[%s229 + $0x28] sm:$0xff]
        %v275 = vld [vmem:[%s229 + $0x30] sm:$0xff]
        %v276 = vld [vmem:[%s229 + $0x38] sm:$0xff]
        %v277 = vadd.f32 %v269, %v270
        %278 = vadd.xlane.f32.xlu0 %v277
        %v279 = vpop.xlane.xlu0 %278
        %v280 = vadd.f32 %v271, %v272
        %281 = vadd.xlane.f32.xlu0 %v280
        %v282 = vpop.xlane.xlu0 %281
        %v283 = vadd.f32 %v273, %v274
        %284 = vadd.xlane.f32.xlu0 %v283
        %v285 = vpop.xlane.xlu0 %284
        %v286 = vadd.f32 %v275, %v276
        %287 = vadd.xlane.f32.xlu0 %v286
        %v288 = vpop.xlane.xlu0 %287
        %v293 = vlaneseq
        %v294 = vshrl.u32 %v293, 7
        %v295 = vsub.s32 0, %v294
        %v296 = vrot.slane %v279, %v295
        %v297 = vlaneseq
        %v298 = vshrl.u32 %v297, 7
        %v299 = vsub.s32 1, %v298
        %v300 = vrot.slane %v279, %v299
        %v301 = vlaneseq
        %v302 = vshrl.u32 %v301, 7
        %v303 = vsub.s32 2, %v302
        %v304 = vrot.slane %v279, %v303
        %v305 = vlaneseq
        %v306 = vshrl.u32 %v305, 7
        %v307 = vsub.s32 3, %v306
        %v308 = vrot.slane %v279, %v307
        %v309 = vlaneseq
        %v310 = vshrl.u32 %v309, 7
        %v311 = vsub.s32 4, %v310
        %v312 = vrot.slane %v279, %v311
        %v313 = vlaneseq
        %v314 = vshrl.u32 %v313, 7
        %v315 = vsub.s32 5, %v314
        %v316 = vrot.slane %v279, %v315
        %v317 = vlaneseq
        %v318 = vshrl.u32 %v317, 7
        %v319 = vsub.s32 6, %v318
        %v320 = vrot.slane %v279, %v319
        %v321 = vlaneseq
        %v322 = vshrl.u32 %v321, 7
        %v323 = vsub.s32 7, %v322
        %v324 = vrot.slane %v279, %v323
        %v325 = vlaneseq
        %v326 = vshrl.u32 %v325, 7
        %v327 = vsub.s32 0, %v326
        %v328 = vrot.slane %v282, %v327
        %v329 = vlaneseq
        %v330 = vshrl.u32 %v329, 7
        %v331 = vsub.s32 1, %v330
        %v332 = vrot.slane %v282, %v331
        %v333 = vlaneseq
        %v334 = vshrl.u32 %v333, 7
        %v335 = vsub.s32 2, %v334
        %v336 = vrot.slane %v282, %v335
        %v337 = vlaneseq
        %v338 = vshrl.u32 %v337, 7
        %v339 = vsub.s32 3, %v338
        %v340 = vrot.slane %v282, %v339
        %v341 = vlaneseq
        %v342 = vshrl.u32 %v341, 7
        %v343 = vsub.s32 4, %v342
        %v344 = vrot.slane %v282, %v343
        %v345 = vlaneseq
        %v346 = vshrl.u32 %v345, 7
        %v347 = vsub.s32 5, %v346
        %v348 = vrot.slane %v282, %v347
        %v349 = vlaneseq
        %v350 = vshrl.u32 %v349, 7
        %v351 = vsub.s32 6, %v350
        %v352 = vrot.slane %v282, %v351
        %v353 = vlaneseq
        %v354 = vshrl.u32 %v353, 7
        %v355 = vsub.s32 7, %v354
        %v356 = vrot.slane %v282, %v355
        %v357 = vlaneseq
        %v358 = vshrl.u32 %v357, 7
        %v359 = vsub.s32 0, %v358
        %v360 = vrot.slane %v285, %v359
        %v361 = vlaneseq
        %v362 = vshrl.u32 %v361, 7
        %v363 = vsub.s32 1, %v362
        %v364 = vrot.slane %v285, %v363
        %v365 = vlaneseq
        %v366 = vshrl.u32 %v365, 7
        %v367 = vsub.s32 2, %v366
        %v368 = vrot.slane %v285, %v367
        %v369 = vlaneseq
        %v370 = vshrl.u32 %v369, 7
        %v371 = vsub.s32 3, %v370
        %v372 = vrot.slane %v285, %v371
        %v373 = vlaneseq
        %v374 = vshrl.u32 %v373, 7
        %v375 = vsub.s32 4, %v374
        %v376 = vrot.slane %v285, %v375
        %v377 = vlaneseq
        %v378 = vshrl.u32 %v377, 7
        %v379 = vsub.s32 5, %v378
        %v380 = vrot.slane %v285, %v379
        %v381 = vlaneseq
        %v382 = vshrl.u32 %v381, 7
        %v383 = vsub.s32 6, %v382
        %v384 = vrot.slane %v285, %v383
        %v385 = vlaneseq
        %v386 = vshrl.u32 %v385, 7
        %v387 = vsub.s32 7, %v386
        %v388 = vrot.slane %v285, %v387
        %v389 = vlaneseq
        %v390 = vshrl.u32 %v389, 7
        %v391 = vsub.s32 0, %v390
        %v392 = vrot.slane %v288, %v391
        %v393 = vlaneseq
        %v394 = vshrl.u32 %v393, 7
        %v395 = vsub.s32 1, %v394
        %v396 = vrot.slane %v288, %v395
        %v397 = vlaneseq
        %v398 = vshrl.u32 %v397, 7
        %v399 = vsub.s32 2, %v398
        %v400 = vrot.slane %v288, %v399
        %v401 = vlaneseq
        %v402 = vshrl.u32 %v401, 7
        %v403 = vsub.s32 3, %v402
        %v404 = vrot.slane %v288, %v403
        %v405 = vlaneseq
        %v406 = vshrl.u32 %v405, 7
        %v407 = vsub.s32 4, %v406
        %v408 = vrot.slane %v288, %v407
        %v409 = vlaneseq
        %v410 = vshrl.u32 %v409, 7
        %v411 = vsub.s32 5, %v410
        %v412 = vrot.slane %v288, %v411
        %v413 = vlaneseq
        %v414 = vshrl.u32 %v413, 7
        %v415 = vsub.s32 6, %v414
        %v416 = vrot.slane %v288, %v415
        %v417 = vlaneseq
        %v418 = vshrl.u32 %v417, 7
        %v419 = vsub.s32 7, %v418
        %v420 = vrot.slane %v288, %v419
        %v421 = vcombine.low %v296, %v300
        %v422 = vcombine.low %v304, %v308
        %v423 = vcombine.low %v312, %v316
        %v424 = vcombine.low %v320, %v324
        %v426 = vunpack.c.l.s4 1966171168
        %v427 = vunpack.c.0.s8 %v426
        %v428 = vlaneseq
        %v429 = vshrl.u32 %v428, 7
        %v430 = vsub.s32 %v427, %v429
        %v431 = vrot.slane %v421, %v430
        %v433 = vunpack.c.l.s4 1966171168
        %v434 = vunpack.c.0.s8 %v433
        %v435 = vlaneseq
        %v436 = vshrl.u32 %v435, 7
        %v437 = vsub.s32 %v434, %v436
        %v438 = vrot.slane %v422, %v437
        %v440 = vunpack.c.l.s4 1966171168
        %v441 = vunpack.c.0.s8 %v440
        %v442 = vlaneseq
        %v443 = vshrl.u32 %v442, 7
        %v444 = vsub.s32 %v441, %v443
        %v445 = vrot.slane %v423, %v444
        %v447 = vunpack.c.l.s4 1966171168
        %v448 = vunpack.c.0.s8 %v447
        %v449 = vlaneseq
        %v450 = vshrl.u32 %v449, 7
        %v451 = vsub.s32 %v448, %v450
        %v452 = vrot.slane %v424, %v451
        %v453 = vcombine.low %v431, %v438
        %v454 = vcombine.low %v445, %v452
        %v456 = vunpack.c.l.s4 1966171168
        %v457 = vunpack.c.0.s8 %v456
        %v458 = vlaneseq
        %v459 = vshrl.u32 %v458, 7
        %v460 = vsub.s32 %v457, %v459
        %v461 = vrot.slane %v453, %v460
        %v463 = vunpack.c.l.s4 1966171168
        %v464 = vunpack.c.0.s8 %v463
        %v465 = vlaneseq
        %v466 = vshrl.u32 %v465, 7
        %v467 = vsub.s32 %v464, %v466
        %v468 = vrot.slane %v454, %v467
        %v469 = vcombine.low %v461, %v468
        %v470 = vcombine.low %v328, %v332
        %v471 = vcombine.low %v336, %v340
        %v472 = vcombine.low %v344, %v348
        %v473 = vcombine.low %v352, %v356
        %v475 = vunpack.c.l.s4 1966171168
        %v476 = vunpack.c.0.s8 %v475
        %v477 = vlaneseq
        %v478 = vshrl.u32 %v477, 7
        %v479 = vsub.s32 %v476, %v478
        %v480 = vrot.slane %v470, %v479
        %v482 = vunpack.c.l.s4 1966171168
        %v483 = vunpack.c.0.s8 %v482
        %v484 = vlaneseq
        %v485 = vshrl.u32 %v484, 7
        %v486 = vsub.s32 %v483, %v485
        %v487 = vrot.slane %v471, %v486
        %v489 = vunpack.c.l.s4 1966171168
        %v490 = vunpack.c.0.s8 %v489
        %v491 = vlaneseq
        %v492 = vshrl.u32 %v491, 7
        %v493 = vsub.s32 %v490, %v492
        %v494 = vrot.slane %v472, %v493
        %v496 = vunpack.c.l.s4 1966171168
        %v497 = vunpack.c.0.s8 %v496
        %v498 = vlaneseq
        %v499 = vshrl.u32 %v498, 7
        %v500 = vsub.s32 %v497, %v499
        %v501 = vrot.slane %v473, %v500
        %v502 = vcombine.low %v480, %v487
        %v503 = vcombine.low %v494, %v501
        %v505 = vunpack.c.l.s4 1966171168
        %v506 = vunpack.c.0.s8 %v505
        %v507 = vlaneseq
        %v508 = vshrl.u32 %v507, 7
        %v509 = vsub.s32 %v506, %v508
        %v510 = vrot.slane %v502, %v509
        %v512 = vunpack.c.l.s4 1966171168
        %v513 = vunpack.c.0.s8 %v512
        %v514 = vlaneseq
        %v515 = vshrl.u32 %v514, 7
        %v516 = vsub.s32 %v513, %v515
        %v517 = vrot.slane %v503, %v516
        %v518 = vcombine.low %v510, %v517
        %v519 = vcombine.low %v360, %v364
        %v520 = vcombine.low %v368, %v372
        %v521 = vcombine.low %v376, %v380
        %v522 = vcombine.low %v384, %v388
        %v524 = vunpack.c.l.s4 1966171168
        %v525 = vunpack.c.0.s8 %v524
        %v526 = vlaneseq
        %v527 = vshrl.u32 %v526, 7
        %v528 = vsub.s32 %v525, %v527
        %v529 = vrot.slane %v519, %v528
        %v531 = vunpack.c.l.s4 1966171168
        %v532 = vunpack.c.0.s8 %v531
        %v533 = vlaneseq
        %v534 = vshrl.u32 %v533, 7
        %v535 = vsub.s32 %v532, %v534
        %v536 = vrot.slane %v520, %v535
        %v538 = vunpack.c.l.s4 1966171168
        %v539 = vunpack.c.0.s8 %v538
        %v540 = vlaneseq
        %v541 = vshrl.u32 %v540, 7
        %v542 = vsub.s32 %v539, %v541
        %v543 = vrot.slane %v521, %v542
        %v545 = vunpack.c.l.s4 1966171168
        %v546 = vunpack.c.0.s8 %v545
        %v547 = vlaneseq
        %v548 = vshrl.u32 %v547, 7
        %v549 = vsub.s32 %v546, %v548
        %v550 = vrot.slane %v522, %v549
        %v551 = vcombine.low %v529, %v536
        %v552 = vcombine.low %v543, %v550
        %v554 = vunpack.c.l.s4 1966171168
        %v555 = vunpack.c.0.s8 %v554
        %v556 = vlaneseq
        %v557 = vshrl.u32 %v556, 7
        %v558 = vsub.s32 %v555, %v557
        %v559 = vrot.slane %v551, %v558
        %v561 = vunpack.c.l.s4 1966171168
        %v562 = vunpack.c.0.s8 %v561
        %v563 = vlaneseq
        %v564 = vshrl.u32 %v563, 7
        %v565 = vsub.s32 %v562, %v564
        %v566 = vrot.slane %v552, %v565
        %v567 = vcombine.low %v559, %v566
        %v568 = vcombine.low %v392, %v396
        %v569 = vcombine.low %v400, %v404
        %v570 = vcombine.low %v408, %v412
        %v571 = vcombine.low %v416, %v420
        %v573 = vunpack.c.l.s4 1966171168
        %v574 = vunpack.c.0.s8 %v573
        %v575 = vlaneseq
        %v576 = vshrl.u32 %v575, 7
        %v577 = vsub.s32 %v574, %v576
        %v578 = vrot.slane %v568, %v577
        %v580 = vunpack.c.l.s4 1966171168
        %v581 = vunpack.c.0.s8 %v580
        %v582 = vlaneseq
        %v583 = vshrl.u32 %v582, 7
        %v584 = vsub.s32 %v581, %v583
        %v585 = vrot.slane %v569, %v584
        %v587 = vunpack.c.l.s4 1966171168
        %v588 = vunpack.c.0.s8 %v587
        %v589 = vlaneseq
        %v590 = vshrl.u32 %v589, 7
        %v591 = vsub.s32 %v588, %v590
        %v592 = vrot.slane %v570, %v591
        %v594 = vunpack.c.l.s4 1966171168
        %v595 = vunpack.c.0.s8 %v594
        %v596 = vlaneseq
        %v597 = vshrl.u32 %v596, 7
        %v598 = vsub.s32 %v595, %v597
        %v599 = vrot.slane %v571, %v598
        %v600 = vcombine.low %v578, %v585
        %v601 = vcombine.low %v592, %v599
        %v603 = vunpack.c.l.s4 1966171168
        %v604 = vunpack.c.0.s8 %v603
        %v605 = vlaneseq
        %v606 = vshrl.u32 %v605, 7
        %v607 = vsub.s32 %v604, %v606
        %v608 = vrot.slane %v600, %v607
        %v610 = vunpack.c.l.s4 1966171168
        %v611 = vunpack.c.0.s8 %v610
        %v612 = vlaneseq
        %v613 = vshrl.u32 %v612, 7
        %v614 = vsub.s32 %v611, %v613
        %v615 = vrot.slane %v601, %v614
        %v616 = vcombine.low %v608, %v615
        %617 = vset.pattern.permute.xlu0 0
        %618 = vperm.xlu0 %617, %v469
        %v619 = vpop.permute.xlu0 %618
        %620 = vset.pattern.permute.xlu0 0
        %621 = vperm.xlu0 %620, %v518
        %v622 = vpop.permute.xlu0 %621
        %623 = vset.pattern.permute.xlu0 0
        %624 = vperm.xlu0 %623, %v567
        %v625 = vpop.permute.xlu0 %624
        %626 = vset.pattern.permute.xlu0 0
        %627 = vperm.xlu0 %626, %v616
        %v628 = vpop.permute.xlu0 %627
        %v629 = vlaneseq
        %v630 = vand.u32 %v629, 127
        %v631 = vlaneseq
        %v632 = vshrl.u32 %v631, 7
        %v633 = vsub.s32 %v630, %v632
        %v634 = vrot.slane %v619, %v633
        %v635 = vadd.s32 %v630, 4294967288
        %v636 = vlaneseq
        %v637 = vshrl.u32 %v636, 7
        %v638 = vsub.s32 %v635, %v637
        %v639 = vrot.slane %v622, %v638
        %vm640 = vcmask 130112
        %v641 = vsel %vm640, %v639, %v634
        %v642 = vadd.s32 %v630, 4294967280
        %v643 = vlaneseq
        %v644 = vshrl.u32 %v643, 7
        %v645 = vsub.s32 %v642, %v644
        %v646 = vrot.slane %v625, %v645
        %vm647 = vcmask 195712
        %v648 = vsel %vm647, %v646, %v641
        %v649 = vadd.s32 %v630, 4294967272
        %v650 = vlaneseq
        %v651 = vshrl.u32 %v650, 7
        %v652 = vsub.s32 %v649, %v651
        %v653 = vrot.slane %v628, %v652
        %vm654 = vcmask 261312
        %v655 = vsel %vm654, %v653, %v648
        %v657 = vunpack.c.l.s4 1966171168
        %v658 = vunpack.c.0.s8 %v657
        %v659 = vlaneseq
        %v660 = vshrl.u32 %v659, 7
        %v661 = vsub.s32 %v658, %v660
        %v662 = vrot.slane %v655, %v661
        %v664 = vunpack.c.l.s4 1966171168
        %v665 = vunpack.c.0.s8 %v664
        %v666 = vlaneseq
        %v667 = vshrl.u32 %v666, 7
        %v668 = vsub.s32 %v665, %v667
        %v669 = vrot.slane %v662, %v668
        %v671 = vadd.f32 %v268, %v669
        %vm672 = vcmask 253952
        %673 = vst.msk [vmem:[#allocation2] sm:$0x1] %vm672, %v671
        // Predicated region
        $region49: #{tpu_custom_call.1} parent=39 // pred_check
          %p674 = pneg %p262
        $region50: #{tpu_custom_call.1} parent=39 // pred_check_branch
          %676 = sbr.rel (%p674) target = $region52
        $region51: #{tpu_custom_call.1} parent=39 // pred_region
          %v677 = vld [vmem:[#allocation2] sm:$0x1]
          %v678 = vmul.f32 %v677, 0.00390625
          %v679 = vld [vmem:[%s1] sm:$0xff]
          %v680 = vld [vmem:[%s1 + $0x8] sm:$0xff]
          %v681 = vld [vmem:[%s1 + $0x10] sm:$0xff]
          %v682 = vld [vmem:[%s1 + $0x18] sm:$0xff]
          %v683 = vld [vmem:[%s2] sm:$0x1]
          %vm684 = vcmask 261120
          %v686 = vsel %vm684, %v678, 0
          %688 = vmatprep.subr.mxu0 0.0
          %689 = vmatpush1.msra.mxu0 %v679
          %690 = vmatprep.subr.mxu0 0.0
          %691 = vmatpush1.msra.mxu0 %v680
          %692 = vmatprep.subr.mxu0 0.0
          %693 = vmatpush1.msra.mxu0 %v681
          %694 = vmatprep.subr.mxu0 0.0
          %695 = vmatpush1.msra.mxu0 %v682
          %696 = vmatprep.subr.mxu0 0.0
          %697 = vmatpush1.msra.mxu0 0.0
          %698 = vmatprep.subr.mxu0 0.0
          %699 = vmatpush1.msra.mxu0 0.0
          %700 = vmatprep.subr.mxu0 0.0
          %701 = vmatpush1.msra.mxu0 0.0
          %702 = vmatprep.subr.mxu0 0.0
          %703 = vmatpush1.msra.mxu0 0.0
          %704 = vmatprep.subr.mxu0 0.0
          %705 = vmatpush1.msra.mxu0 0.0
          %706 = vmatprep.subr.mxu0 0.0
          %707 = vmatpush1.msra.mxu0 0.0
          %708 = vmatprep.subr.mxu0 0.0
          %709 = vmatpush1.msra.mxu0 0.0
          %710 = vmatprep.subr.mxu0 0.0
          %711 = vmatpush1.msra.mxu0 0.0
          %712 = vmatprep.subr.mxu0 0.0
          %713 = vmatpush1.msra.mxu0 0.0
          %714 = vmatprep.subr.mxu0 0.0
          %715 = vmatpush1.msra.mxu0 0.0
          %716 = vmatprep.subr.mxu0 0.0
          %717 = vmatpush1.msra.mxu0 0.0
          %718 = vmatprep.subr.mxu0 0.0
          %719 = vmatpush1.msra.mxu0 0.0
          %720 = vmatprep.subr.mxu0 0.0
          %721 = vmatpush1.msra.mxu0 0.0
          %722 = vmatprep.subr.mxu0 0.0
          %723 = vmatpush1.msra.mxu0 0.0
          %724 = vmatprep.subr.mxu0 0.0
          %725 = vmatpush1.msra.mxu0 0.0
          %726 = vmatprep.subr.mxu0 0.0
          %727 = vmatpush1.msra.mxu0 0.0
          %728 = vmatprep.subr.mxu0 0.0
          %729 = vmatpush1.msra.mxu0 0.0
          %730 = vmatprep.subr.mxu0 0.0
          %731 = vmatpush1.msra.mxu0 0.0
          %732 = vmatprep.subr.mxu0 0.0
          %733 = vmatpush1.msra.mxu0 0.0
          %734 = vmatprep.subr.mxu0 0.0
          %735 = vmatpush1.msra.mxu0 0.0
          %736 = vmatprep.subr.mxu0 0.0
          %737 = vmatpush1.msra.mxu0 0.0
          %738 = vmatprep.subr.mxu0 0.0
          %739 = vmatpush1.msra.mxu0 0.0
          %740 = vmatprep.subr.mxu0 0.0
          %741 = vmatpush1.msra.mxu0 0.0
          %742 = vmatprep.subr.mxu0 0.0
          %743 = vmatpush1.msra.mxu0 0.0
          %744 = vmatprep.subr.mxu0 0.0
          %745 = vmatpush1.msra.mxu0 0.0
          %746 = vmatprep.subr.mxu0 0.0
          %747 = vmatpush1.msra.mxu0 0.0
          %748 = vmatprep.subr.mxu0 0.0
          %749 = vmatpush1.msra.mxu0 0.0
          %750 = vmatprep.subr.mxu0 0.0
          %751 = vmatpush1.msra.mxu0 0.0
          %752 = vmatprep.mubr.f32.mxu0 0.0
          %753 = vmatmul.mubr.f32.gmra.mrb[0].mxu0 %v686
          %v754 = vpop.f32.mrb[0].mxu0
          %v755 = vadd.f32 %v683, %v754
          %v756 = vpop.f32.mrb[0].mxu0
          %757 = vdwg.mxu0
          %v758 = vmax.f32 %v755, 0.0
          %v759 = vld [vmem:[%s3] sm:$0x3]
          %v760 = vld [vmem:[%s4] sm:$0x1]
          %vm761 = vcmask 15360
          %v763 = vsel %vm761, %v758, 0
          %vm765 = vcmask 1041408
          %v767 = vsel %vm765, %v759, 0
          %769 = vmatprep.subr.mxu0 0.0
          %770 = vmatpush1.msra.mxu0 %v767
          %771 = vmatprep.subr.mxu0 0.0
          %772 = vmatpush1.msra.mxu0 0.0
          %773 = vmatprep.subr.mxu0 0.0
          %774 = vmatpush1.msra.mxu0 0.0
          %775 = vmatprep.subr.mxu0 0.0
          %776 = vmatpush1.msra.mxu0 0.0
          %777 = vmatprep.subr.mxu0 0.0
          %778 = vmatpush1.msra.mxu0 0.0
          %779 = vmatprep.subr.mxu0 0.0
          %780 = vmatpush1.msra.mxu0 0.0
          %781 = vmatprep.subr.mxu0 0.0
          %782 = vmatpush1.msra.mxu0 0.0
          %783 = vmatprep.subr.mxu0 0.0
          %784 = vmatpush1.msra.mxu0 0.0
          %785 = vmatprep.subr.mxu0 0.0
          %786 = vmatpush1.msra.mxu0 0.0
          %787 = vmatprep.subr.mxu0 0.0
          %788 = vmatpush1.msra.mxu0 0.0
          %789 = vmatprep.subr.mxu0 0.0
          %790 = vmatpush1.msra.mxu0 0.0
          %791 = vmatprep.subr.mxu0 0.0
          %792 = vmatpush1.msra.mxu0 0.0
          %793 = vmatprep.subr.mxu0 0.0
          %794 = vmatpush1.msra.mxu0 0.0
          %795 = vmatprep.subr.mxu0 0.0
          %796 = vmatpush1.msra.mxu0 0.0
          %797 = vmatprep.subr.mxu0 0.0
          %798 = vmatpush1.msra.mxu0 0.0
          %799 = vmatprep.subr.mxu0 0.0
          %800 = vmatpush1.msra.mxu0 0.0
          %801 = vmatprep.subr.mxu0 0.0
          %802 = vmatpush1.msra.mxu0 0.0
          %803 = vmatprep.subr.mxu0 0.0
          %804 = vmatpush1.msra.mxu0 0.0
          %805 = vmatprep.subr.mxu0 0.0
          %806 = vmatpush1.msra.mxu0 0.0
          %807 = vmatprep.subr.mxu0 0.0
          %808 = vmatpush1.msra.mxu0 0.0
          %809 = vmatprep.subr.mxu0 0.0
          %810 = vmatpush1.msra.mxu0 0.0
          %811 = vmatprep.subr.mxu0 0.0
          %812 = vmatpush1.msra.mxu0 0.0
          %813 = vmatprep.subr.mxu0 0.0
          %814 = vmatpush1.msra.mxu0 0.0
          %815 = vmatprep.subr.mxu0 0.0
          %816 = vmatpush1.msra.mxu0 0.0
          %817 = vmatprep.subr.mxu0 0.0
          %818 = vmatpush1.msra.mxu0 0.0
          %819 = vmatprep.subr.mxu0 0.0
          %820 = vmatpush1.msra.mxu0 0.0
          %821 = vmatprep.subr.mxu0 0.0
          %822 = vmatpush1.msra.mxu0 0.0
          %823 = vmatprep.subr.mxu0 0.0
          %824 = vmatpush1.msra.mxu0 0.0
          %825 = vmatprep.subr.mxu0 0.0
          %826 = vmatpush1.msra.mxu0 0.0
          %827 = vmatprep.subr.mxu0 0.0
          %828 = vmatpush1.msra.mxu0 0.0
          %829 = vmatprep.subr.mxu0 0.0
          %830 = vmatpush1.msra.mxu0 0.0
          %831 = vmatprep.subr.mxu0 0.0
          %832 = vmatpush1.msra.mxu0 0.0
          %833 = vmatprep.mubr.f32.mxu0 0.0
          %834 = vmatmul.mubr.f32.gmra.mrb[0].mxu0 %v763
          %v835 = vpop.f32.mrb[0].mxu0
          %v836 = vadd.f32 %v760, %v835
          %v837 = vpop.f32.mrb[0].mxu0
          %838 = vdwg.mxu0
          %v839 = vxor.u32 %v836, 2147483648
          %v840 = vmul.f32 %v839, 1.442695
          %v841 = vpow.pop %v840
          %v842 = vadd.f32 %v841, 1.0
          %v843 = vrcp.pop %v842
          %v844 = vmul.f32 1.0, %v843
          %v845 = vlaneseq
          %v846 = vshrl.u32 %v845, 7
          %v847 = vsub.s32 0, %v846
          %v848 = vrot.slane %v844, %v847
          %850 = vbcast.lane.b32.xlu0 %v848, 256
          %v851 = vpop.permute.xlu0 %850
          %s853 = sor.u32 256, 8
          %854 = vbcast.lane.b32.xlu0 %v848, %s853
          %v855 = vpop.permute.xlu0 %854
          %s857 = sor.u32 256, 16
          %858 = vbcast.lane.b32.xlu0 %v848, %s857
          %v859 = vpop.permute.xlu0 %858
          %s861 = sor.u32 256, 24
          %862 = vbcast.lane.b32.xlu0 %v848, %s861
          %v863 = vpop.permute.xlu0 %862
          %vm864 = vcmask 7168
          %865 = vst.msk [vmem:[%s261] sm:$0xff] %vm864, %v851
          %866 = vst.msk [vmem:[%s261 + $0x8] sm:$0xff] %vm864, %v855
          %867 = vst.msk [vmem:[%s261 + $0x10] sm:$0xff] %vm864, %v859
          %868 = vst.msk [vmem:[%s261 + $0x18] sm:$0xff] %vm864, %v863
        $region52: #{tpu_custom_call.1} parent=39 // pred_fallthru
          _
        %p869 = scmp.lt.s32.totalorder %s23, 1
        %s870 = scalar_select %p869, %s23, 1
        %s871 = smul.addr %s870, 4
        %s872 = smul.addr %s871, 8
        %s873 = scalar_lea.vmem %s5, %s872
        // Predicated region
        $region53: #{tpu_custom_call.1} parent=39 // pred_check
          %p874 = pneg %p161
        $region54: #{tpu_custom_call.1} parent=39 // pred_check_branch
          %876 = sbr.rel (%p874) target = $region56
        $region55: #{tpu_custom_call.1} parent=39 // pred_region
          _
        $region56: #{tpu_custom_call.1} parent=39 // pred_fallthru
          _
      $region40: #{tpu_custom_call.1} parent=5 // pred_fallthru
        _
      %p877 = scmp.le.s32.totalorder 2, %s14
      // Predicated region
      $region57: #{tpu_custom_call.1} parent=5 // pred_check
        %p878 = pneg %p877
      $region58: #{tpu_custom_call.1} parent=5 // pred_check_branch
        %880 = sbr.rel (%p878) target = $region60
      $region59: #{tpu_custom_call.1} parent=5 // pred_region
        %s881 = ssub.s32 %s14, 2
        // Predicated region
        $region61: #{tpu_custom_call.1} parent=59 // pred_check
          %p882 = pneg %p167
        $region62: #{tpu_custom_call.1} parent=59 // pred_check_branch
          %884 = sbr.rel (%p882) target = $region64
        $region63: #{tpu_custom_call.1} parent=59 // pred_region
          %p885 = scmp.lt.s32.totalorder %s25, 1
          %s886 = scalar_select %p885, %s25, 1
          %s887 = smul.addr %s886, 4
          %s888 = smul.addr %s887, 8
          %s889 = scalar_lea.vmem %s5, %s888
        $region64: #{tpu_custom_call.1} parent=59 // pred_fallthru
          _
      $region60: #{tpu_custom_call.1} parent=5 // pred_fallthru
        _
    $region6: #{tpu_custom_call.1} parent=1 // loop_footer
      %s18 = sadd.s32 1, %s14
    $region7: #{tpu_custom_call.1} parent=1 // loop_footer_branch
      %13 = sbr.rel target = $region3
    $region8: #{tpu_custom_call.1} parent=1 // loop_exit
      _
    %890 = vsyncpa [#allocation4], 1
    %s891 = scalar_lea.sflag [#allocation4], 1
    %892 = vsyncpa %s891, 1

</llo_original>
